<compile_context>
chip_gen: v7x
topology: tpu7x:2x2x1
jax: 0.10.0
libtpu: 0.0.40
codegen_flags: <defaults>
</compile_context>

<pallas_src>
import jax
import jax.numpy as jnp
from jax.experimental import pallas as pl
from jax.experimental.pallas import tpu as pltpu


def _round_up(v: int, m: int) -> int:
    return ((v + m - 1) // m) * m


def _pick_tile(dim: int, max_tile: int, align: int) -> int:
    """Pick a tile size: multiple of `align`, <= max_tile, low padding waste.

    Prefers the largest tile whose padded size is within ~12.5% of the minimal
    (align-rounded) padded size; among candidates it also considers an "even
    split" of dim into ceil(dim / max_tile) tiles (maximizes tile size with
    near-zero padding, which minimizes weight HBM re-reads for the batch axis).
    """
    max_tile = max(align, (max_tile // align) * align)
    dp_min = _round_up(dim, align)
    if dp_min <= max_tile:
        return dp_min
    cands = set()
    t = align
    while t <= max_tile:
        cands.add(t)
        t *= 2
    n = -(-dim // max_tile)                                   # even split
    cands.add(min(max_tile, _round_up(-(-dim // n), align)))
    good = [t for t in cands if _round_up(dim, t) <= 1.125 * dp_min]
    if good:
        return max(good)
    return min(cands, key=lambda t: (_round_up(dim, t), -t))


def _linear2d_kernel(t_ref, w_ref, b_ref, o_ref):
    # t_ref: (tm, tk) operand dtype  activations
    # w_ref: (tk, tn) operand dtype  weight, pre-transposed once to (D, XY)
    # b_ref: (1,  tn) f32            bias
    # o_ref: (tm, tn) f32            output tile; same (i, j) block across all
    #                                k -> VMEM-resident, used as the accumulator
    k = pl.program_id(2)

    @pl.when(k == 0)
    def _():
        # Fold the bias into the init: accumulator starts at broadcast(bias).
        o_ref[...] = jnp.broadcast_to(b_ref[...], o_ref.shape)

    # Plain NN matmul (no transpose anywhere), f32 accumulation on the MXU.
    o_ref[...] += jnp.dot(t_ref[...], w_ref[...],
                          preferred_element_type=jnp.float32)


def prepare_linear2d_params(weight, bias, *, max_tn=512, max_tk=512,
                            operand_dtype=jnp.bfloat16):
    """One-time parameter prep: pad, cast and transpose the weight.

    weight: (x*y, D)  PyTorch nn.Linear layout
    bias:   (x*y,)
    Returns a dict consumed by linear2d_forward.
    """
    XY, D = weight.shape
    assert bias.shape == (XY,)
    tn = _pick_tile(XY, max_tn, 128)          # lane-dense output columns
    tk = _pick_tile(D, max_tk, 128)
    XYp = _round_up(XY, tn)
    Dp = _round_up(D, tk)
    # Transpose once to (D, XY) so the kernel contracts LHS lanes vs RHS
    # sublanes with no in-kernel transpose, then zero-pad to tile multiples.
    w_t = jnp.pad(weight.astype(operand_dtype).T,
                  ((0, Dp - D), (0, XYp - XY)))
    b_p = jnp.pad(bias.astype(jnp.float32), (0, XYp - XY)).reshape(1, XYp)
    return {"w_t": w_t, "bias": b_p, "tn": tn, "tk": tk,
            "XY": XY, "D": D, "operand_dtype": operand_dtype}


def linear2d_forward(t, params, x_dim, y_dim, *, max_tm=512):
    """PyTorch Linear2d forward: reshape(t @ weight.T + bias, (-1, x, y)).

    t:      (B, D) float
    params: output of prepare_linear2d_params (weight already padded/cast/T)
    returns (B, x, y) float32
    """
    B, D = t.shape
    XY = params["XY"]
    assert D == params["D"]
    assert XY == x_dim * y_dim
    w_t, b_p = params["w_t"], params["bias"]
    tn, tk = params["tn"], params["tk"]
    Dp, XYp = w_t.shape
    od = params["operand_dtype"]

    # Batch tile: multiple of 16 (bf16 sublane packing), as large as possible
    # so the weight matrix is streamed from HBM as few times (Bp/tm) as possible.
    tm = _pick_tile(B, max_tm, 16)
    Bp = _round_up(B, tm)

    # v7x has 2 TensorCores: if both parallel axes collapsed to one block,
    # split the output-column axis so both cores get work (free on v5e/v6e).
    if Bp // tm == 1 and XYp // tn == 1 and tn % 256 == 0:
        tn //= 2

    # Per-call activation prep only (weight/bias already prepared).
    t_p = t.astype(od)
    if (Bp, Dp) != (B, D):
        t_p = jnp.pad(t_p, ((0, Bp - B), (0, Dp - D)))

    grid = (Bp // tm, XYp // tn, Dp // tk)    # reduction axis (K) last

    out2d = pl.pallas_call(
        _linear2d_kernel,
        out_shape=jax.ShapeDtypeStruct((Bp, XYp), jnp.float32),
        grid_spec=pltpu.PrefetchScalarGridSpec(
            num_scalar_prefetch=0,
            grid=grid,
            in_specs=[
                # activations: depend on (batch tile, k tile)
                pl.BlockSpec((tm, tk), lambda i, j, k: (i, k)),
                # weight (D, XY) layout: independent of the batch index i
                pl.BlockSpec((tk, tn), lambda i, j, k: (k, j)),
                # bias: only depends on the output-column tile
                pl.BlockSpec((1, tn), lambda i, j, k: (0, j)),
            ],
            # same (i, j) block for every k -> VMEM-resident accumulator
            out_specs=pl.BlockSpec((tm, tn), lambda i, j, k: (i, j)),
        ),
        compiler_params=pltpu.CompilerParams(
            dimension_semantics=("parallel", "parallel", "arbitrary"),
        ),
    )(t_p, w_t, b_p)

    # Strip padding (no-op when nothing was padded), then the free reshape.
    return out2d[:B, :XY].reshape(B, x_dim, y_dim)


if __name__ == "__main__":
    key = jax.random.PRNGKey(0)

    # --- case 1: toy shapes matching the module: Linear(32, 4*8), bf16 path --
    B, prev_layer_size, x_dim, y_dim = 8, 32, 4, 8
    XY = x_dim * y_dim
    k_t, k_w, k_b, key = jax.random.split(key, 4)
    bound = 1.0 / jnp.sqrt(jnp.float32(prev_layer_size))
    t = jax.random.normal(k_t, (B, prev_layer_size), dtype=jnp.float32)
    weight = jax.random.uniform(k_w, (XY, prev_layer_size), dtype=jnp.float32,
                                minval=-bound, maxval=bound)
    bias = jax.random.uniform(k_b, (XY,), dtype=jnp.float32,
                              minval=-bound, maxval=bound)

    params = prepare_linear2d_params(weight, bias)          # one-time prep
    out = jax.block_until_ready(linear2d_forward(t, params, x_dim, y_dim))
    ref = (t @ weight.T + bias).reshape(B, x_dim, y_dim)
    assert out.shape == (B, x_dim, y_dim)
    assert jnp.allclose(out, ref, atol=3e-2, rtol=3e-2)      # bf16 operands

    # --- case 2: ragged shapes exercising padding + multi-tile (i,j,k) grid --
    B2, D2, x2, y2 = 48, 300, 10, 20
    XY2 = x2 * y2
    k_t2, k_w2, k_b2, key = jax.random.split(key, 4)
    bound2 = 1.0 / jnp.sqrt(jnp.float32(D2))
    t2 = jax.random.normal(k_t2, (B2, D2), dtype=jnp.float32)
    w2 = jax.random.uniform(k_w2, (XY2, D2), dtype=jnp.float32,
                            minval=-bound2, maxval=bound2)
    b2 = jax.random.uniform(k_b2, (XY2,), dtype=jnp.float32,
                            minval=-bound2, maxval=bound2)

    # Small tile caps force a (3, 2, 3) grid -> K accumulation + padding paths.
    params2 = prepare_linear2d_params(w2, b2, max_tn=128, max_tk=128)
    out2 = jax.block_until_ready(
        linear2d_forward(t2, params2, x2, y2, max_tm=32))
    ref2 = (t2 @ w2.T + b2).reshape(B2, x2, y2)
    assert out2.shape == (B2, x2, y2)
    assert jnp.allclose(out2, ref2, atol=3e-2, rtol=3e-2)

    # --- case 3: f32-operand path (closer parity with PyTorch f32 Linear) ----
    params3 = prepare_linear2d_params(weight, bias, operand_dtype=jnp.float32)
    out3 = jax.block_until_ready(linear2d_forward(t, params3, x_dim, y_dim))
    # Tolerance kept conservative (agnostic to the MXU's f32 pass count).
    assert jnp.allclose(out3, ref, atol=2e-2, rtol=2e-2)

    print("KERNEL_OK")
</pallas_src>

<mosaic_0001>
module attributes {stable_mosaic.version = 11 : i64} {
  func.func @_linear2d_kernel(%arg0: i32, %arg1: i32, %arg2: i32, %arg3: memref<16x128xbf16, #tpu.memory_space<vmem>>, %arg4: memref<128x128xbf16, #tpu.memory_space<vmem>>, %arg5: memref<1x128xf32, #tpu.memory_space<vmem>>, %arg6: memref<16x128xf32, #tpu.memory_space<vmem>>) attributes {dimension_semantics = [#tpu.dimension_semantics<parallel>, #tpu.dimension_semantics<parallel>, #tpu.dimension_semantics<arbitrary>], iteration_bounds = array<i64: 1, 1, 1>, scalar_prefetch = 0 : i64, scratch_operands = 0 : i64, tpu.core_type = #tpu.core_type<tc>, window_params = [{transform_indices = @transform_0, window_bounds = array<i64: 16, 128>}, {transform_indices = @transform_1, window_bounds = array<i64: 128, 128>}, {transform_indices = @transform_2, window_bounds = array<i64: 1, 128>}, {transform_indices = @transform_3, window_bounds = array<i64: 16, 128>}]} {
    %c0_i32 = arith.constant 0 : i32
    %0 = arith.cmpi eq, %arg2, %c0_i32 : i32
    %1 = arith.extui %0 : i1 to i32
    %c0_i32_0 = arith.constant 0 : i32
    %2 = arith.cmpi ne, %1, %c0_i32_0 : i32
    scf.if %2 {
      %c0_8 = arith.constant 0 : index
      %c0_9 = arith.constant 0 : index
      %9 = vector.load %arg5[%c0_8, %c0_9] : memref<1x128xf32, #tpu.memory_space<vmem>>, vector<1x128xf32>
      %10 = vector.shape_cast %9 : vector<1x128xf32> to vector<1x128xf32>
      %11 = vector.broadcast %10 : vector<1x128xf32> to vector<16x128xf32>
      %c0_10 = arith.constant 0 : index
      %c0_11 = arith.constant 0 : index
      %12 = vector.load %arg6[%c0_10, %c0_11] : memref<16x128xf32, #tpu.memory_space<vmem>>, vector<16x128xf32>
      tpu.vector_store %arg6[%c0_10, %c0_11], %11 {strides = array<i32>} : memref<16x128xf32, #tpu.memory_space<vmem>>, vector<16x128xf32>,
    } else {
    }
    %c0 = arith.constant 0 : index
    %c0_1 = arith.constant 0 : index
    %3 = vector.load %arg6[%c0, %c0_1] : memref<16x128xf32, #tpu.memory_space<vmem>>, vector<16x128xf32>
    %c0_2 = arith.constant 0 : index
    %c0_3 = arith.constant 0 : index
    %4 = vector.load %arg3[%c0_2, %c0_3] : memref<16x128xbf16, #tpu.memory_space<vmem>>, vector<16x128xbf16>
    %c0_4 = arith.constant 0 : index
    %c0_5 = arith.constant 0 : index
    %5 = vector.load %arg4[%c0_4, %c0_5] : memref<128x128xbf16, #tpu.memory_space<vmem>>, vector<128x128xbf16>
    %cst = arith.constant dense<0.000000e+00> : vector<16x128xf32>
    %6 = tpu.matmul %4, %5, %cst {dimension_numbers = #tpu.dot_dimension_numbers<[1], [0], [0], [1], [0, 0, 1, 1], [], []>} : vector<16x128xbf16>, vector<128x128xbf16>, vector<16x128xf32> -> vector<16x128xf32>
    %7 = arith.addf %3, %6 : vector<16x128xf32>
    %c0_6 = arith.constant 0 : index
    %c0_7 = arith.constant 0 : index
    %8 = vector.load %arg6[%c0_6, %c0_7] : memref<16x128xf32, #tpu.memory_space<vmem>>, vector<16x128xf32>
    tpu.vector_store %arg6[%c0_6, %c0_7], %7 {strides = array<i32>} : memref<16x128xf32, #tpu.memory_space<vmem>>, vector<16x128xf32>,
    return
  }
  func.func @transform_0(%arg0: i32, %arg1: i32, %arg2: i32) -> (i32, i32) {
    %c0_i32 = arith.constant 0 : i32
    return %arg0, %arg2 : i32, i32
  }
  func.func @transform_1(%arg0: i32, %arg1: i32, %arg2: i32) -> (i32, i32) {
    %c0_i32 = arith.constant 0 : i32
    return %arg2, %arg1 : i32, i32
  }
  func.func @transform_2(%arg0: i32, %arg1: i32, %arg2: i32) -> (i32, i32) {
    %c0_i32 = arith.constant 0 : i32
    %c0_i32_0 = arith.constant 0 : i32
    return %c0_i32, %arg1 : i32, i32
  }
  func.func @transform_3(%arg0: i32, %arg1: i32, %arg2: i32) -> (i32, i32) {
    %c0_i32 = arith.constant 0 : i32
    return %arg0, %arg1 : i32, i32
  }
}

</mosaic_0001>

<llo_original>
// kernel: tpu_custom_call.1
$region0: #{tpu_custom_call.1}
  #allocation0 [shape = 'u32[]', space=smem, size = 0x4, offset = 0x4, fixed_abs, tag = 'smem constant byte address 0x4 - core index']
  #allocation1 [shape = 'u32[144,128]{1,0:T(1,128)}', space=vmem, size = 0x12000, scoped, tag = 'internal scratch']
  %s0 = inlined_call_operand.hbm [shape: bf16[16,128], index: 0, kind: input, shape index: {}]
  %s1 = inlined_call_operand.hbm [shape: bf16[128,128], index: 1, kind: input, shape index: {}]
  %s2 = inlined_call_operand.vmem [shape: f32[1,128], index: 2, kind: input, shape index: {}]
  %s3 = inlined_call_operand.hbm [shape: f32[16,128], index: 3, kind: output, shape index: {}]
  %s4 = sld [smem:[#allocation0]]
  $region34: #{tpu_custom_call.1} parent=0
    _
  %s6 = ssub.s32 1, %s4
  %s7 = scalar_select 0, %s6, %s4
  $region1: #{tpu_custom_call.1} parent=0
    #allocation2 [shape = 'u8[4096]{0}', space=vmem, size = 0x1000, scoped, tag = 'input window, operand 0, single buffered']
    #allocation3 [shape = 's32[1]{0}', space=sflag, size = 0x4, scoped, tag = 'scoped memory for tpu_custom_call.1']
    #allocation4 [shape = 's32[1]{0}', space=sflag, size = 0x4, scoped, tag = 'scoped memory for tpu_custom_call.1']
    #allocation5 [shape = 'u8[32768]{0}', space=vmem, size = 0x8000, scoped, tag = 'input window, operand 1, single buffered']
    #allocation6 [shape = 's32[1]{0}', space=sflag, size = 0x4, scoped, tag = 'scoped memory for tpu_custom_call.1']
    #allocation7 [shape = 'u8[8192]{0}', space=vmem, size = 0x2000, scoped, tag = 'output window, operand 0, single buffered']
    %8 = vsyncpa [#allocation3], 0
    %9 = vsyncpa [#allocation6], 0
    %10 = vsyncpa [#allocation4], 0
    // Predicated region
    $region2: #{tpu_custom_call.1} parent=1 // pred_check
      _
    $region3: #{tpu_custom_call.1} parent=1 // pred_check_branch
      %12 = sbr.rel (0) target = $region5
    $region4: #{tpu_custom_call.1} parent=1 // pred_region
      %s14 = ssub.s32 128, 128
      %15 = vsyncadd [#allocation3], %s14
      %s16 = sshll.u32 [#allocation2], 4
      %s17 = int_to_ptr.vmem [resolvable:$true] %s16
      %22 = dma.hbm_to_vmem [thread:$0]  %s0, 128, %s17, [#allocation3], 64, 64, 4
    $region5: #{tpu_custom_call.1} parent=1 // pred_fallthru
      _
    // Predicated region
    $region6: #{tpu_custom_call.1} parent=1 // pred_check
      _
    $region7: #{tpu_custom_call.1} parent=1 // pred_check_branch
      %24 = sbr.rel (0) target = $region9
    $region8: #{tpu_custom_call.1} parent=1 // pred_region
      %s26 = ssub.s32 1024, 1024
      %27 = vsyncadd [#allocation6], %s26
      %s28 = sshll.u32 [#allocation5], 4
      %s29 = int_to_ptr.vmem [resolvable:$true] %s28
      %34 = dma.hbm_to_vmem [thread:$0]  %s1, 1024, %s29, [#allocation6], 64, 64, 4
    $region9: #{tpu_custom_call.1} parent=1 // pred_fallthru
      _
    // Predicated region
    $region10: #{tpu_custom_call.1} parent=1 // pred_check
      _
    $region11: #{tpu_custom_call.1} parent=1 // pred_check_branch
      %36 = sbr.rel (0) target = $region13
    $region12: #{tpu_custom_call.1} parent=1 // pred_region
      _
    $region13: #{tpu_custom_call.1} parent=1 // pred_fallthru
      _
    // Predicated region
    $region14: #{tpu_custom_call.1} parent=1 // pred_check
      _
    $region15: #{tpu_custom_call.1} parent=1 // pred_check_branch
      %38 = sbr.rel (0) target = $region17
    $region16: #{tpu_custom_call.1} parent=1 // pred_region
      %39 = dma.done [#allocation3], 128
    $region17: #{tpu_custom_call.1} parent=1 // pred_fallthru
      _
    // Predicated region
    $region18: #{tpu_custom_call.1} parent=1 // pred_check
      _
    $region19: #{tpu_custom_call.1} parent=1 // pred_check_branch
      %41 = sbr.rel (0) target = $region21
    $region20: #{tpu_custom_call.1} parent=1 // pred_region
      %42 = dma.done [#allocation6], 1024
    $region21: #{tpu_custom_call.1} parent=1 // pred_fallthru
      _
    %p44 = scmp.eq.s32.totalorder 0, 0
    // Predicated region
    $region22: #{tpu_custom_call.1} parent=1 // pred_check
      %p45 = pneg %p44
    $region23: #{tpu_custom_call.1} parent=1 // pred_check_branch
      %47 = sbr.rel (%p45) target = $region25
    $region24: #{tpu_custom_call.1} parent=1 // pred_region
      %v48 = vld [vmem:[%s2] sm:$0x1]
      %v50 = vlaneseq
      %v51 = vshrl.u32 %v50, 7
      %v52 = vsub.s32 0, %v51
      %v53 = vrot.slane %v48, %v52
      %55 = vst [vmem:[#allocation7] sm:$0xff] %v53
      %56 = vst [vmem:[#allocation7 + $0x8] sm:$0xff] %v53
    $region25: #{tpu_custom_call.1} parent=1 // pred_fallthru
      _
    %v57 = vld [vmem:[#allocation7] sm:$0xff]
    %v58 = vld [vmem:[#allocation7 + $0x8] sm:$0xff]
    %v59 = vld [vmem:[#allocation2] sm:$0xf]
    %v60 = vld [vmem:[#allocation2 + $0x4] sm:$0xf]
    %v61 = vld [vmem:[#allocation5] sm:$0xf]
    %v62 = vld [vmem:[#allocation5 + $0x4] sm:$0xf]
    %v63 = vld [vmem:[#allocation5 + $0x8] sm:$0xf]
    %v64 = vld [vmem:[#allocation5 + $0xc] sm:$0xf]
    %v65 = vld [vmem:[#allocation5 + $0x10] sm:$0xf]
    %v66 = vld [vmem:[#allocation5 + $0x14] sm:$0xf]
    %v67 = vld [vmem:[#allocation5 + $0x18] sm:$0xf]
    %v68 = vld [vmem:[#allocation5 + $0x1c] sm:$0xf]
    %v69 = vld [vmem:[#allocation5 + $0x20] sm:$0xf]
    %v70 = vld [vmem:[#allocation5 + $0x24] sm:$0xf]
    %v71 = vld [vmem:[#allocation5 + $0x28] sm:$0xf]
    %v72 = vld [vmem:[#allocation5 + $0x2c] sm:$0xf]
    %v73 = vld [vmem:[#allocation5 + $0x30] sm:$0xf]
    %v74 = vld [vmem:[#allocation5 + $0x34] sm:$0xf]
    %v75 = vld [vmem:[#allocation5 + $0x38] sm:$0xf]
    %v76 = vld [vmem:[#allocation5 + $0x3c] sm:$0xf]
    %v79 = vunpack.c.l.b16 %v59
    %v80 = vunpack.c.l.b16 %v60
    %v81 = vpack.c.b16 %v80, %v79
    %v99 = vunpack.c.l.b16 %v61
    %v100 = vunpack.c.l.b16 %v62
    %v101 = vunpack.c.l.b16 %v63
    %v102 = vunpack.c.l.b16 %v64
    %v103 = vunpack.c.l.b16 %v65
    %v104 = vunpack.c.l.b16 %v66
    %v105 = vunpack.c.l.b16 %v67
    %v106 = vunpack.c.l.b16 %v68
    %v107 = vunpack.c.l.b16 %v69
    %v108 = vunpack.c.l.b16 %v70
    %v109 = vunpack.c.l.b16 %v71
    %v110 = vunpack.c.l.b16 %v72
    %v111 = vunpack.c.l.b16 %v73
    %v112 = vunpack.c.l.b16 %v74
    %v113 = vunpack.c.l.b16 %v75
    %v114 = vunpack.c.l.b16 %v76
    %v115 = vpack.c.b16 %v100, %v99
    %v116 = vpack.c.b16 %v102, %v101
    %v117 = vpack.c.b16 %v104, %v103
    %v118 = vpack.c.b16 %v106, %v105
    %v119 = vpack.c.b16 %v108, %v107
    %v120 = vpack.c.b16 %v110, %v109
    %v121 = vpack.c.b16 %v112, %v111
    %v122 = vpack.c.b16 %v114, %v113
    %131 = vmatprep.subr.bf16.mxu0 0
    %132 = vmatpush1.bf16.msra.mxu0 %v115
    %133 = vmatprep.subr.bf16.mxu0 0
    %134 = vmatpush1.bf16.msra.mxu0 %v116
    %135 = vmatprep.subr.bf16.mxu0 0
    %136 = vmatpush1.bf16.msra.mxu0 %v117
    %137 = vmatprep.subr.bf16.mxu0 0
    %138 = vmatpush1.bf16.msra.mxu0 %v118
    %139 = vmatprep.subr.bf16.mxu0 0
    %140 = vmatpush1.bf16.msra.mxu0 %v119
    %141 = vmatprep.subr.bf16.mxu0 0
    %142 = vmatpush1.bf16.msra.mxu0 %v120
    %143 = vmatprep.subr.bf16.mxu0 0
    %144 = vmatpush1.bf16.msra.mxu0 %v121
    %145 = vmatprep.subr.bf16.mxu0 0
    %146 = vmatpush1.bf16.msra.mxu0 %v122
    %147 = vmatprep.subr.bf16.mxu0 0
    %148 = vmatpush1.bf16.msra.mxu0 0
    %149 = vmatprep.subr.bf16.mxu0 0
    %150 = vmatpush1.bf16.msra.mxu0 0
    %151 = vmatprep.subr.bf16.mxu0 0
    %152 = vmatpush1.bf16.msra.mxu0 0
    %153 = vmatprep.subr.bf16.mxu0 0
    %154 = vmatpush1.bf16.msra.mxu0 0
    %155 = vmatprep.subr.bf16.mxu0 0
    %156 = vmatpush1.bf16.msra.mxu0 0
    %157 = vmatprep.subr.bf16.mxu0 0
    %158 = vmatpush1.bf16.msra.mxu0 0
    %159 = vmatprep.subr.bf16.mxu0 0
    %160 = vmatpush1.bf16.msra.mxu0 0
    %161 = vmatprep.subr.bf16.mxu0 0
    %162 = vmatpush1.bf16.msra.mxu0 0
    %163 = vmatprep.mubr.bf16.mxu0 0
    %164 = vmatmul.mubr.bf16.gmra.mrb[0].mxu0 %v81
    %v165 = vpop.f32.mrb[0].mxu0
    %v166 = vadd.f32 0.0, %v165
    %v167 = vpop.f32.mrb[0].mxu0
    %v168 = vpop.f32.mrb[0].mxu0
    %v169 = vadd.f32 0.0, %v168
    %v170 = vpop.f32.mrb[0].mxu0
    %171 = vdwg.mxu0
    %v172 = vadd.f32 %v57, %v166
    %v173 = vadd.f32 %v58, %v169
    %174 = vst [vmem:[#allocation7] sm:$0xff] %v172
    %175 = vst [vmem:[#allocation7 + $0x8] sm:$0xff] %v173
    // Predicated region
    $region26: #{tpu_custom_call.1} parent=1 // pred_check
      _
    $region27: #{tpu_custom_call.1} parent=1 // pred_check_branch
      %177 = sbr.rel (0) target = $region29
    $region28: #{tpu_custom_call.1} parent=1 // pred_region
      %s179 = ssub.s32 256, 256
      %180 = vsyncadd [#allocation4], %s179
      %s181 = sshll.u32 [#allocation7], 4
      %s182 = int_to_ptr.vmem [resolvable:$true] %s181
      %187 = dma.vmem_to_hbm [thread:$0]  %s182, 256, %s3, [#allocation4], 128, 128, 8
    $region29: #{tpu_custom_call.1} parent=1 // pred_fallthru
      _
    // Predicated region
    $region30: #{tpu_custom_call.1} parent=1 // pred_check
      _
    $region31: #{tpu_custom_call.1} parent=1 // pred_check_branch
      %189 = sbr.rel (0) target = $region33
    $region32: #{tpu_custom_call.1} parent=1 // pred_region
      %190 = dma.done [#allocation4], 256
    $region33: #{tpu_custom_call.1} parent=1 // pred_fallthru
      _
    %191 = vsyncpa [#allocation3], 1
    %192 = vsyncpa [#allocation6], 1
    %193 = vsyncpa [#allocation4], 1

</llo_original>
